<compile_context>
chip_gen: v5e
topology: v5e:2x2
jax: 0.10.0
libtpu: 0.0.40
codegen_flags: <defaults>
</compile_context>

<pallas_src>
import jax
import jax.numpy as jnp
from jax.experimental import pallas as pl
from jax.experimental.pallas import tpu as pltpu


def _round_up(a: int, b: int) -> int:
    return -(-a // b) * b


def _sublane_pack(dtype) -> int:
    # Packed sublane tile: 8 rows for 4-byte, 16 for 2-byte, 32 for 1-byte.
    return max(8, 32 // jnp.dtype(dtype).itemsize)


def _largest_valid_ti(I: int, cap: int):
    """Largest multiple of 128 that divides I and is <= cap (None if none)."""
    c = (min(cap, I) // 128) * 128
    while c >= 128:
        if I % c == 0:
            return c
        c -= 128
    return None


def _vmem_capacity_bytes() -> int:
    try:
        info = pltpu.get_tpu_info()
        cap = getattr(info, "vmem_capacity_bytes", None)
        if cap:
            return int(cap)
    except Exception:
        pass
    return 128 * 1024 * 1024  # v5e/v6e default; v7x parts report 64 MiB above.


def _mlp_kernel_nobias(x_ref, wg_ref, wu_ref, wd_ref, o_ref, acc_ref):
    k = pl.program_id(1)

    @pl.when(k == 0)
    def _():
        acc_ref[...] = jnp.zeros_like(acc_ref)

    x = x_ref[...]
    gate = jnp.dot(x, wg_ref[...], preferred_element_type=jnp.float32)
    up = jnp.dot(x, wu_ref[...], preferred_element_type=jnp.float32)
    h = (gate * jax.nn.sigmoid(gate)) * up
    acc_ref[...] += jnp.dot(h.astype(wd_ref.dtype), wd_ref[...],
                            preferred_element_type=jnp.float32)

    @pl.when(k == pl.num_programs(1) - 1)
    def _():
        o_ref[...] = acc_ref[...].astype(o_ref.dtype)


def _mlp_kernel_bias(x_ref, wg_ref, wu_ref, wd_ref, bg_ref, bu_ref, bd_ref,
                     o_ref, acc_ref):
    k = pl.program_id(1)

    @pl.when(k == 0)
    def _():
        acc_ref[...] = jnp.zeros_like(acc_ref)

    x = x_ref[...]
    gate = jnp.dot(x, wg_ref[...], preferred_element_type=jnp.float32)
    gate = gate + bg_ref[...].astype(jnp.float32)
    up = jnp.dot(x, wu_ref[...], preferred_element_type=jnp.float32)
    up = up + bu_ref[...].astype(jnp.float32)
    h = (gate * jax.nn.sigmoid(gate)) * up
    acc_ref[...] += jnp.dot(h.astype(wd_ref.dtype), wd_ref[...],
                            preferred_element_type=jnp.float32)

    @pl.when(k == pl.num_programs(1) - 1)
    def _():
        out = acc_ref[...] + bd_ref[...].astype(jnp.float32)
        o_ref[...] = out.astype(o_ref.dtype)


def bailing_mlp(x, w_gate_up, w_down, b_gate_up=None, b_down=None, *,
                tm=None, ti=256, compute_dtype=None):
    """Fused BailingMLP forward.

    x:          [T, H]
    w_gate_up:  [H, 2*I]   (gate columns first, up columns second)
    w_down:     [I, H]
    b_gate_up:  [1, 2*I] or [2*I] or None
    b_down:     [1, H]   or [H]   or None
    tm:         token tile (None -> 512 on >=100 MiB VMEM parts, else 256)
    ti:         intermediate tile (multiple of 128)
    compute_dtype: optional dtype (e.g. jnp.bfloat16) to cast inputs to
                   before the kernel; accumulation stays f32.
    """
    orig_dtype = x.dtype
    if compute_dtype is not None:
        x = x.astype(compute_dtype)
        w_gate_up = w_gate_up.astype(compute_dtype)
        w_down = w_down.astype(compute_dtype)
        if b_gate_up is not None:
            b_gate_up = b_gate_up.astype(compute_dtype)
            b_down = b_down.astype(compute_dtype)

    T, H = x.shape
    H2, twoI = w_gate_up.shape
    assert H2 == H
    I = twoI // 2
    assert w_down.shape == (I, H)
    use_bias = b_gate_up is not None

    x_item = jnp.dtype(x.dtype).itemsize
    w_item = jnp.dtype(w_down.dtype).itemsize

    vmem_cap = _vmem_capacity_bytes()
    budget = max(24 << 20, vmem_cap - (16 << 20))   # headroom for Mosaic scratch

    if tm is None:
        tm = 512 if vmem_cap >= (100 << 20) else 256

    # ---- token tile: align to the packed sublane tile of the dtype ----------
    sub = _sublane_pack(x.dtype)
    tm_eff = max(sub, min(_round_up(tm, sub), _round_up(T, sub)))

    # ---- intermediate tile ---------------------------------------------------
    ti_req = max(128, (ti // 128) * 128)
    ti0 = _largest_valid_ti(I, ti_req)
    if ti0 is None:
        # Rare: I not a multiple of 128 -> pad with zero columns/rows
        # (silu(0) * 0 contributes nothing to the output).
        I_eff = _round_up(I, 128)
        ti_eff = _largest_valid_ti(I_eff, ti_req)
        padded_I = True
    else:
        I_eff = I
        ti_eff = ti0
        padded_I = False

    # ---- VMEM budgeting / tile auto-shrink -----------------------------------
    def est_vmem(tm_, ti_):
        return (2 * tm_ * H * x_item              # x tile (double-buffered)
                + 2 * 2 * H * ti_ * w_item        # gate + up weight tiles
                + 2 * ti_ * H * w_item            # down weight tile
                + 2 * tm_ * H * x_item            # output tile
                + tm_ * H * 4                     # f32 accumulator scratch
                + tm_ * ti_ * (4 + 4 + x_item))   # gate/up f32 + h temporaries

    while est_vmem(tm_eff, ti_eff) > budget:
        if ti_eff > 128:
            nxt = _largest_valid_ti(I_eff, ti_eff - 128)
            if nxt is not None:
                ti_eff = nxt
                continue
        if tm_eff > sub:
            tm_eff = max(sub, (tm_eff // 2) // sub * sub)
            continue
        break

    n_k = I_eff // ti_eff

    # ---- pad token dim -------------------------------------------------------
    T_pad = _round_up(T, tm_eff)
    if T_pad != T:
        x = jnp.pad(x, ((0, T_pad - T), (0, 0)))

    # ---- build weight operands (no copies on the fast path) ------------------
    if padded_I:
        wg = jnp.pad(w_gate_up[:, :I], ((0, 0), (0, I_eff - I)))
        wu = jnp.pad(w_gate_up[:, I:], ((0, 0), (0, I_eff - I)))
        wd = jnp.pad(w_down, ((0, I_eff - I), (0, 0)))
        if use_bias:
            b2 = b_gate_up.reshape(1, twoI)
            bg = jnp.pad(b2[:, :I], ((0, 0), (0, I_eff - I)))
            bu = jnp.pad(b2[:, I:], ((0, 0), (0, I_eff - I)))
    else:
        wg = w_gate_up          # same array passed twice; no slicing copy
        wu = w_gate_up
        wd = w_down
        if use_bias:
            bg = b_gate_up.reshape(1, twoI)
            bu = bg

    grid = (T_pad // tm_eff, n_k)

    # ---- specs ---------------------------------------------------------------
    x_spec = pl.BlockSpec((tm_eff, H), lambda i, k: (i, 0))
    wg_spec = pl.BlockSpec((H, ti_eff), lambda i, k: (0, k))
    if padded_I:
        wu_spec = pl.BlockSpec((H, ti_eff), lambda i, k: (0, k))
    else:
        # "up" columns live in the second half of the merged weight: offset the
        # column block index by the number of gate blocks.
        wu_spec = pl.BlockSpec((H, ti_eff), lambda i, k: (0, k + n_k))
    wd_spec = pl.BlockSpec((ti_eff, H), lambda i, k: (k, 0))
    out_spec = pl.BlockSpec((tm_eff, H), lambda i, k: (i, 0))

    if use_bias:
        b_down_2d = b_down.reshape(1, H)
        bg_spec = pl.BlockSpec((1, ti_eff), lambda i, k: (0, k))
        if padded_I:
            bu_spec = pl.BlockSpec((1, ti_eff), lambda i, k: (0, k))
        else:
            bu_spec = pl.BlockSpec((1, ti_eff), lambda i, k: (0, k + n_k))
        bd_spec = pl.BlockSpec((1, H), lambda i, k: (0, 0))
        kernel = _mlp_kernel_bias
        in_specs = [x_spec, wg_spec, wu_spec, wd_spec, bg_spec, bu_spec, bd_spec]
        args = (x, wg, wu, wd, bg, bu, b_down_2d)
    else:
        kernel = _mlp_kernel_nobias
        in_specs = [x_spec, wg_spec, wu_spec, wd_spec]
        args = (x, wg, wu, wd)

    est = est_vmem(tm_eff, ti_eff)
    vmem_limit = int(min(budget, max(2 * est, 32 << 20)))

    cost = pl.CostEstimate(
        flops=int(6 * T_pad * H * I_eff),
        transcendentals=int(T_pad * I_eff),
        bytes_accessed=int(2 * T_pad * H * x_item                 # x read + out write
                           + grid[0] * 3 * H * I_eff * w_item),   # weights per token tile
    )

    out = pl.pallas_call(
        kernel,
        out_shape=jax.ShapeDtypeStruct((T_pad, H), x.dtype),
        grid_spec=pltpu.PrefetchScalarGridSpec(
            num_scalar_prefetch=0,
            grid=grid,
            in_specs=in_specs,
            out_specs=out_spec,
            scratch_shapes=[pltpu.VMEM((tm_eff, H), jnp.float32)],
        ),
        compiler_params=pltpu.CompilerParams(
            dimension_semantics=("parallel", "arbitrary"),
            vmem_limit_bytes=vmem_limit,
        ),
        cost_estimate=cost,
    )(*args)

    if T_pad != T:
        out = out[:T]
    if out.dtype != orig_dtype:
        out = out.astype(orig_dtype)
    return out


def bailing_mlp_ref(x, w_gate_up, w_down, b_gate_up=None, b_down=None):
    xf = x.astype(jnp.float32)
    gu = xf @ w_gate_up.astype(jnp.float32)
    if b_gate_up is not None:
        gu = gu + b_gate_up.reshape(1, -1).astype(jnp.float32)
    I = w_down.shape[0]
    h = jax.nn.silu(gu[:, :I]) * gu[:, I:]
    out = h @ w_down.astype(jnp.float32)
    if b_down is not None:
        out = out + b_down.reshape(1, -1).astype(jnp.float32)
    return out.astype(x.dtype)


if __name__ == "__main__":
    # Small shapes consistent with the module: [tokens, hidden] in/out.
    tokens = 12            # not sublane/tile aligned -> exercises token padding
    hidden_size = 256
    intermediate_size = 512

    key = jax.random.PRNGKey(0)
    k_x, k_wgu, k_wd, k_bgu, k_bd = jax.random.split(key, 5)

    x = jax.random.normal(k_x, (tokens, hidden_size), dtype=jnp.float32)
    # Weights already transposed for x @ W layout (gate half first, up second).
    w_gate_up = jax.random.normal(
        k_wgu, (hidden_size, 2 * intermediate_size), dtype=jnp.float32) * 0.05
    w_down = jax.random.normal(
        k_wd, (intermediate_size, hidden_size), dtype=jnp.float32) * 0.05
    b_gate_up = jax.random.normal(
        k_bgu, (1, 2 * intermediate_size), dtype=jnp.float32) * 0.01
    b_down = jax.random.normal(
        k_bd, (1, hidden_size), dtype=jnp.float32) * 0.01

    # 1) No-bias f32 path (config.use_bias default for BailingMoe is False).
    out = bailing_mlp(x, w_gate_up, w_down, ti=256)
    out = jax.block_until_ready(out)
    ref = bailing_mlp_ref(x, w_gate_up, w_down)
    assert out.shape == (tokens, hidden_size)
    assert jnp.allclose(out, ref, atol=2e-3, rtol=2e-3), "no-bias mismatch"

    # 2) Bias f32 path.
    out_b = bailing_mlp(x, w_gate_up, w_down, b_gate_up, b_down, ti=256)
    out_b = jax.block_until_ready(out_b)
    ref_b = bailing_mlp_ref(x, w_gate_up, w_down, b_gate_up, b_down)
    assert jnp.allclose(out_b, ref_b, atol=2e-3, rtol=2e-3), "bias mismatch"

    # 3) bf16 serving path (cast at call site, f32 accumulation inside).
    out_bf = bailing_mlp(x, w_gate_up, w_down, b_gate_up, b_down,
                         ti=256, compute_dtype=jnp.bfloat16)
    out_bf = jax.block_until_ready(out_bf)
    ref_bf = bailing_mlp_ref(x.astype(jnp.bfloat16),
                             w_gate_up.astype(jnp.bfloat16),
                             w_down.astype(jnp.bfloat16),
                             b_gate_up.astype(jnp.bfloat16),
                             b_down.astype(jnp.bfloat16))
    assert jnp.allclose(out_bf.astype(jnp.float32),
                        ref_bf.astype(jnp.float32),
                        atol=2e-2, rtol=2e-2), "bf16 mismatch"

    # 4) Intermediate size not a multiple of 128 -> padded fallback path.
    I_odd = 320
    w_gu_odd = jax.random.normal(
        k_wgu, (hidden_size, 2 * I_odd), dtype=jnp.float32) * 0.05
    w_dn_odd = jax.random.normal(
        k_wd, (I_odd, hidden_size), dtype=jnp.float32) * 0.05
    out_o = bailing_mlp(x, w_gu_odd, w_dn_odd, ti=256)
    out_o = jax.block_until_ready(out_o)
    ref_o = bailing_mlp_ref(x, w_gu_odd, w_dn_odd)
    assert jnp.allclose(out_o, ref_o, atol=2e-3, rtol=2e-3), "padded-I mismatch"

    print("KERNEL_OK")
</pallas_src>

<mosaic_0001>
module attributes {stable_mosaic.version = 11 : i64} {
  func.func @_mlp_kernel_nobias(%arg0: i32, %arg1: i32, %arg2: memref<16x256xf32, #tpu.memory_space<vmem>>, %arg3: memref<256x256xf32, #tpu.memory_space<vmem>>, %arg4: memref<256x256xf32, #tpu.memory_space<vmem>>, %arg5: memref<256x256xf32, #tpu.memory_space<vmem>>, %arg6: memref<16x256xf32, #tpu.memory_space<vmem>>, %arg7: memref<16x256xf32, #tpu.memory_space<vmem>>) attributes {dimension_semantics = [#tpu.dimension_semantics<parallel>, #tpu.dimension_semantics<arbitrary>], iteration_bounds = array<i64: 1, 2>, scalar_prefetch = 0 : i64, scratch_operands = 1 : i64, tpu.core_type = #tpu.core_type<tc>, window_params = [{transform_indices = @transform_0, window_bounds = array<i64: 16, 256>}, {transform_indices = @transform_1, window_bounds = array<i64: 256, 256>}, {transform_indices = @transform_2, window_bounds = array<i64: 256, 256>}, {transform_indices = @transform_3, window_bounds = array<i64: 256, 256>}, {transform_indices = @transform_4, window_bounds = array<i64: 16, 256>}]} {
    %c0_i32 = arith.constant 0 : i32
    %0 = arith.cmpi eq, %arg1, %c0_i32 : i32
    %1 = arith.extui %0 : i1 to i32
    %c0_i32_0 = arith.constant 0 : i32
    %2 = arith.cmpi ne, %1, %c0_i32_0 : i32
    scf.if %2 {
      %cst_16 = arith.constant 0.000000e+00 : f32
      %23 = vector.broadcast %cst_16 : f32 to vector<16x256xf32>
      %c0_17 = arith.constant 0 : index
      %c0_18 = arith.constant 0 : index
      %24 = vector.load %arg7[%c0_17, %c0_18] : memref<16x256xf32, #tpu.memory_space<vmem>>, vector<16x256xf32>
      tpu.vector_store %arg7[%c0_17, %c0_18], %23 {strides = array<i32>} : memref<16x256xf32, #tpu.memory_space<vmem>>, vector<16x256xf32>,
    } else {
    }
    %c0 = arith.constant 0 : index
    %c0_1 = arith.constant 0 : index
    %3 = vector.load %arg2[%c0, %c0_1] : memref<16x256xf32, #tpu.memory_space<vmem>>, vector<16x256xf32>
    %c0_2 = arith.constant 0 : index
    %c0_3 = arith.constant 0 : index
    %4 = vector.load %arg3[%c0_2, %c0_3] : memref<256x256xf32, #tpu.memory_space<vmem>>, vector<256x256xf32>
    %cst = arith.constant dense<0.000000e+00> : vector<16x256xf32>
    %5 = tpu.matmul %3, %4, %cst {dimension_numbers = #tpu.dot_dimension_numbers<[1], [0], [0], [1], [0, 0, 1, 1], [], []>} : vector<16x256xf32>, vector<256x256xf32>, vector<16x256xf32> -> vector<16x256xf32>
    %c0_4 = arith.constant 0 : index
    %c0_5 = arith.constant 0 : index
    %6 = vector.load %arg4[%c0_4, %c0_5] : memref<256x256xf32, #tpu.memory_space<vmem>>, vector<256x256xf32>
    %cst_6 = arith.constant dense<0.000000e+00> : vector<16x256xf32>
    %7 = tpu.matmul %3, %6, %cst_6 {dimension_numbers = #tpu.dot_dimension_numbers<[1], [0], [0], [1], [0, 0, 1, 1], [], []>} : vector<16x256xf32>, vector<256x256xf32>, vector<16x256xf32> -> vector<16x256xf32>
    %8 = arith.negf %5 : vector<16x256xf32>
    %9 = math.exp %8 : vector<16x256xf32>
    %cst_7 = arith.constant 1.000000e+00 : f32
    %10 = vector.broadcast %cst_7 : f32 to vector<16x256xf32>
    %11 = arith.addf %10, %9 : vector<16x256xf32>
    %12 = arith.divf %10, %11 : vector<16x256xf32>
    %13 = arith.mulf %5, %12 : vector<16x256xf32>
    %14 = arith.mulf %13, %7 : vector<16x256xf32>
    %c0_8 = arith.constant 0 : index
    %c0_9 = arith.constant 0 : index
    %15 = vector.load %arg7[%c0_8, %c0_9] : memref<16x256xf32, #tpu.memory_space<vmem>>, vector<16x256xf32>
    %c0_10 = arith.constant 0 : index
    %c0_11 = arith.constant 0 : index
    %16 = vector.load %arg5[%c0_10, %c0_11] : memref<256x256xf32, #tpu.memory_space<vmem>>, vector<256x256xf32>
    %cst_12 = arith.constant dense<0.000000e+00> : vector<16x256xf32>
    %17 = tpu.matmul %14, %16, %cst_12 {dimension_numbers = #tpu.dot_dimension_numbers<[1], [0], [0], [1], [0, 0, 1, 1], [], []>} : vector<16x256xf32>, vector<256x256xf32>, vector<16x256xf32> -> vector<16x256xf32>
    %18 = arith.addf %15, %17 : vector<16x256xf32>
    %c0_13 = arith.constant 0 : index
    %c0_14 = arith.constant 0 : index
    %19 = vector.load %arg7[%c0_13, %c0_14] : memref<16x256xf32, #tpu.memory_space<vmem>>, vector<16x256xf32>
    tpu.vector_store %arg7[%c0_13, %c0_14], %18 {strides = array<i32>} : memref<16x256xf32, #tpu.memory_space<vmem>>, vector<16x256xf32>,
    %c1_i32 = arith.constant 1 : i32
    %20 = arith.cmpi eq, %arg1, %c1_i32 : i32
    %21 = arith.extui %20 : i1 to i32
    %c0_i32_15 = arith.constant 0 : i32
    %22 = arith.cmpi ne, %21, %c0_i32_15 : i32
    scf.if %22 {
      %c0_16 = arith.constant 0 : index
      %c0_17 = arith.constant 0 : index
      %23 = vector.load %arg7[%c0_16, %c0_17] : memref<16x256xf32, #tpu.memory_space<vmem>>, vector<16x256xf32>
      %c0_18 = arith.constant 0 : index
      %c0_19 = arith.constant 0 : index
      %24 = vector.load %arg6[%c0_18, %c0_19] : memref<16x256xf32, #tpu.memory_space<vmem>>, vector<16x256xf32>
      tpu.vector_store %arg6[%c0_18, %c0_19], %23 {strides = array<i32>} : memref<16x256xf32, #tpu.memory_space<vmem>>, vector<16x256xf32>,
    } else {
    }
    return
  }
  func.func @transform_0(%arg0: i32, %arg1: i32) -> (i32, i32) {
    %c0_i32 = arith.constant 0 : i32
    %c0_i32_0 = arith.constant 0 : i32
    return %arg0, %c0_i32 : i32, i32
  }
  func.func @transform_1(%arg0: i32, %arg1: i32) -> (i32, i32) {
    %c0_i32 = arith.constant 0 : i32
    %c0_i32_0 = arith.constant 0 : i32
    return %c0_i32, %arg1 : i32, i32
  }
  func.func @transform_2(%arg0: i32, %arg1: i32) -> (i32, i32) {
    %c2_i32 = arith.constant 2 : i32
    %0 = arith.addi %arg1, %c2_i32 : i32
    %c0_i32 = arith.constant 0 : i32
    %c0_i32_0 = arith.constant 0 : i32
    return %c0_i32, %0 : i32, i32
  }
  func.func @transform_3(%arg0: i32, %arg1: i32) -> (i32, i32) {
    %c0_i32 = arith.constant 0 : i32
    %c0_i32_0 = arith.constant 0 : i32
    return %arg1, %c0_i32 : i32, i32
  }
  func.func @transform_4(%arg0: i32, %arg1: i32) -> (i32, i32) {
    %c0_i32 = arith.constant 0 : i32
    %c0_i32_0 = arith.constant 0 : i32
    return %arg0, %c0_i32 : i32, i32
  }
}

</mosaic_0001>

<llo_original>
// kernel: tpu_custom_call.1
$region0: #{tpu_custom_call.1}
  #allocation0 [shape = 'u32[]', space=smem, size = 0x4, offset = 0x4, fixed_abs, tag = 'smem constant byte address 0x4 - core index']
  #allocation1 [shape = 'u32[72,128]{1,0:T(1,128)}', space=vmem, size = 0x9000, scoped, tag = 'internal scratch']
  #allocation2 [shape = 'f32[16,256]{1,0:T(8,128)}', space=vmem, size = 0x4000, scoped, tag = 'scratch operand']
  %s0 = inlined_call_operand.hbm [shape: f32[16,256], index: 0, kind: input, shape index: {}]
  %s1 = inlined_call_operand.hbm [shape: f32[256,1024], index: 1, kind: input, shape index: {}]
  %s2 = inlined_call_operand.hbm [shape: f32[256,1024], index: 2, kind: input, shape index: {}]
  %s3 = inlined_call_operand.hbm [shape: f32[512,256], index: 3, kind: input, shape index: {}]
  %s4 = inlined_call_operand.hbm [shape: f32[16,256], index: 4, kind: output, shape index: {}]
  %s5 = sld [smem:[#allocation0]]
  $region73: #{tpu_custom_call.1} parent=0
    _
  %s7 = ssub.s32 1, %s5
  %s8 = scalar_select 0, %s7, %s5
  $region1: #{tpu_custom_call.1} parent=0
    #allocation3 [shape = 'u8[16384]{0}', space=vmem, size = 0x4000, scoped, tag = 'input window, operand 0, single buffered']
    #allocation4 [shape = 's32[2]{0}', space=sflag, size = 0x8, scoped, tag = 'scoped memory for tpu_custom_call.1']
    #allocation5 [shape = 's32[2]{0}', space=sflag, size = 0x8, scoped, tag = 'scoped memory for tpu_custom_call.1']
    #allocation6 [shape = 'u8[524288]{0}', space=vmem, size = 0x80000, scoped, tag = 'input window, operand 1']
    #allocation7 [shape = 's32[2]{0}', space=sflag, size = 0x8, scoped, tag = 'scoped memory for tpu_custom_call.1']
    #allocation8 [shape = 'u8[524288]{0}', space=vmem, size = 0x80000, scoped, tag = 'input window, operand 2']
    #allocation9 [shape = 'u8[524288]{0}', space=vmem, size = 0x80000, scoped, tag = 'input window, operand 3']
    #allocation10 [shape = 's32[2]{0}', space=sflag, size = 0x8, scoped, tag = 'scoped memory for tpu_custom_call.1']
    #allocation11 [shape = 'u8[16384]{0}', space=vmem, size = 0x4000, scoped, tag = 'output window, operand 0, single buffered']
    %9 = vsyncpa [#allocation4], 0
    %10 = vsyncpa [#allocation7], 0
    %s11 = scalar_lea.sflag [#allocation7], 1
    %12 = vsyncpa %s11, 0
    %13 = vsyncpa [#allocation10], 0
    %s14 = scalar_lea.sflag [#allocation10], 1
    %15 = vsyncpa %s14, 0
    %16 = vsyncpa [#allocation5], 0
    loop: start=0, step=1, limit=4
    $region2: #{tpu_custom_call.1} parent=1 // loop_pre_header
      _
    $region3: #{tpu_custom_call.1} parent=1 // loop_header
      %s18 = sphi 0, %s22
      %p19 = scmp.ge.s32.totalorder %s18, 4
      %s25 = sphi 0, %s37
      %s26 = sphi 0, %s33
      %s27 = sphi 0, %s25
      %s28 = sphi 0, %s26
      %s29 = sphi 0, %s27
      %s30 = sphi 0, %s28
      %s40 = sphi 0, %s42
      %s43 = sphi 0, %s40
      %s44 = sphi 0, %s43
      %s60 = sphi 0, %s44
      %s66 = sphi 0, %s68
      %s69 = sphi 0, %s66
      %s70 = sphi 0, %s69
      %s86 = sphi 0, %s70
      %s94 = sphi 0, %s96
      %s97 = sphi 0, %s94
      %s98 = sphi 0, %s97
      %s114 = sphi 0, %s98
      %s120 = sphi 0, %s122
      %s123 = sphi 0, %s120
      %s124 = sphi 0, %s123
      %s140 = sphi 0, %s124
      %s146 = sphi 0, %s148
      %s149 = sphi 0, %s146
      %s150 = sphi 0, %s149
      %s166 = sphi 0, %s150
    $region4: #{tpu_custom_call.1} parent=1 // loop_header_branch
      %21 = sbr.rel (%p19) target = $region8
    $region5: #{tpu_custom_call.1} parent=1 // loop_body
      %s23 = ssub.s32 %s18, 1
      %s24 = ssub.s32 %s18, 2
      %s31 = sadd.s32 1, %s26
      %p32 = scmp.ge.s32.totalorder %s31, 2
      %s33 = scalar_select %p32, 0, %s31
      %s34 = sadd.s32 1, %s25
      %s35 = scalar_select %p32, %s34, %s25
      %p36 = scmp.ge.s32.totalorder %s35, 1
      %s37 = scalar_select %p36, 0, %s35
      %s38 = ssub.s32 %s25, %s37
      %p39 = scmp.eq.s32.totalorder %s38, 0
      %s41 = sadd.s32 %s40, 1
      %s42 = scalar_select %p39, %s40, %s41
      %p45 = pneg %p39
      %p46 = scmp.eq.s32.totalorder %s18, 1
      %p47 = por %p45, %p46
      %p48 = scmp.ne.s32.totalorder %s40, %s43
      %p49 = scmp.eq.s32.totalorder %s18, 0
      %p50 = por %p48, %p49
      %p51 = scmp.ne.s32.totalorder %s40, %s43
      %p52 = scmp.eq.s32.totalorder %s23, 1
      %p53 = por %p51, %p52
      %p54 = scmp.ne.s32.totalorder %s43, %s44
      %p55 = scmp.eq.s32.totalorder %s23, 0
      %p56 = por %p54, %p55
      %p57 = scmp.ne.s32.totalorder %s43, %s44
      %p58 = scmp.eq.s32.totalorder %s24, 1
      %p59 = por %p57, %p58
      %p61 = scmp.ne.s32.totalorder %s44, %s60
      %p62 = scmp.eq.s32.totalorder %s24, 0
      %p63 = por %p61, %p62
      %s64 = ssub.s32 %s26, %s33
      %p65 = scmp.eq.s32.totalorder %s64, 0
      %s67 = sadd.s32 %s66, 1
      %s68 = scalar_select %p65, %s66, %s67
      %p71 = pneg %p65
      %p72 = scmp.eq.s32.totalorder %s18, 1
      %p73 = por %p71, %p72
      %p74 = scmp.ne.s32.totalorder %s66, %s69
      %p75 = scmp.eq.s32.totalorder %s18, 0
      %p76 = por %p74, %p75
      %p77 = scmp.ne.s32.totalorder %s66, %s69
      %p78 = scmp.eq.s32.totalorder %s23, 1
      %p79 = por %p77, %p78
      %p80 = scmp.ne.s32.totalorder %s69, %s70
      %p81 = scmp.eq.s32.totalorder %s23, 0
      %p82 = por %p80, %p81
      %p83 = scmp.ne.s32.totalorder %s69, %s70
      %p84 = scmp.eq.s32.totalorder %s24, 1
      %p85 = por %p83, %p84
      %p87 = scmp.ne.s32.totalorder %s70, %s86
      %p88 = scmp.eq.s32.totalorder %s24, 0
      %p89 = por %p87, %p88
      %s90 = sadd.s32 %s26, 2
      %s91 = sadd.s32 %s33, 2
      %s92 = ssub.s32 %s90, %s91
      %p93 = scmp.eq.s32.totalorder %s92, 0
      %s95 = sadd.s32 %s94, 1
      %s96 = scalar_select %p93, %s94, %s95
      %p99 = pneg %p93
      %p100 = scmp.eq.s32.totalorder %s18, 1
      %p101 = por %p99, %p100
      %p102 = scmp.ne.s32.totalorder %s94, %s97
      %p103 = scmp.eq.s32.totalorder %s18, 0
      %p104 = por %p102, %p103
      %p105 = scmp.ne.s32.totalorder %s94, %s97
      %p106 = scmp.eq.s32.totalorder %s23, 1
      %p107 = por %p105, %p106
      %p108 = scmp.ne.s32.totalorder %s97, %s98
      %p109 = scmp.eq.s32.totalorder %s23, 0
      %p110 = por %p108, %p109
      %p111 = scmp.ne.s32.totalorder %s97, %s98
      %p112 = scmp.eq.s32.totalorder %s24, 1
      %p113 = por %p111, %p112
      %p115 = scmp.ne.s32.totalorder %s98, %s114
      %p116 = scmp.eq.s32.totalorder %s24, 0
      %p117 = por %p115, %p116
      %s118 = ssub.s32 %s26, %s33
      %p119 = scmp.eq.s32.totalorder %s118, 0
      %s121 = sadd.s32 %s120, 1
      %s122 = scalar_select %p119, %s120, %s121
      %p125 = pneg %p119
      %p126 = scmp.eq.s32.totalorder %s18, 1
      %p127 = por %p125, %p126
      %p128 = scmp.ne.s32.totalorder %s120, %s123
      %p129 = scmp.eq.s32.totalorder %s18, 0
      %p130 = por %p128, %p129
      %p131 = scmp.ne.s32.totalorder %s120, %s123
      %p132 = scmp.eq.s32.totalorder %s23, 1
      %p133 = por %p131, %p132
      %p134 = scmp.ne.s32.totalorder %s123, %s124
      %p135 = scmp.eq.s32.totalorder %s23, 0
      %p136 = por %p134, %p135
      %p137 = scmp.ne.s32.totalorder %s123, %s124
      %p138 = scmp.eq.s32.totalorder %s24, 1
      %p139 = por %p137, %p138
      %p141 = scmp.ne.s32.totalorder %s124, %s140
      %p142 = scmp.eq.s32.totalorder %s24, 0
      %p143 = por %p141, %p142
      %s144 = ssub.s32 %s25, %s37
      %p145 = scmp.eq.s32.totalorder %s144, 0
      %s147 = sadd.s32 %s146, 1
      %s148 = scalar_select %p145, %s146, %s147
      %p151 = pneg %p145
      %p152 = scmp.eq.s32.totalorder %s18, 1
      %p153 = por %p151, %p152
      %p154 = scmp.ne.s32.totalorder %s146, %s149
      %p155 = scmp.eq.s32.totalorder %s18, 0
      %p156 = por %p154, %p155
      %p157 = scmp.ne.s32.totalorder %s146, %s149
      %p158 = scmp.eq.s32.totalorder %s23, 1
      %p159 = por %p157, %p158
      %p160 = scmp.ne.s32.totalorder %s149, %s150
      %p161 = scmp.eq.s32.totalorder %s23, 0
      %p162 = por %p160, %p161
      %p163 = scmp.ne.s32.totalorder %s149, %s150
      %p164 = scmp.eq.s32.totalorder %s24, 1
      %p165 = por %p163, %p164
      %p167 = scmp.ne.s32.totalorder %s150, %s166
      %p168 = scmp.eq.s32.totalorder %s24, 0
      %p169 = por %p167, %p168
      %p170 = scmp.le.s32.totalorder 1, %s18
      %p171 = scmp.lt.s32.totalorder %s18, 3
      %p172 = pnand %p170, %p171
      %p173 = pneg %p172
      // Predicated region
      $region9: #{tpu_custom_call.1} parent=5 // pred_check
        _
      $region10: #{tpu_custom_call.1} parent=5 // pred_check_branch
        %175 = sbr.rel (%p172) target = $region12
      $region11: #{tpu_custom_call.1} parent=5 // pred_region
        %s176 = ssub.s32 %s18, 1
        // Predicated region
        $region13: #{tpu_custom_call.1} parent=11 // pred_check
          %p177 = pneg %p56
        $region14: #{tpu_custom_call.1} parent=11 // pred_check_branch
          %179 = sbr.rel (%p177) target = $region16
        $region15: #{tpu_custom_call.1} parent=11 // pred_region
          %s180 = smul.u32 2, %s27
          %182 = vsyncadd [#allocation4], 0
          %s183 = smul.addr %s180, 2
          %s184 = smul.addr %s183, 8
          %s185 = scalar_lea.hbm %s0, %s184
          %s186 = sshll.u32 %s185, 4
          %s187 = int_to_ptr.hbm [resolvable:$true] %s186
          %s188 = sshll.u32 [#allocation3], 4
          %s189 = int_to_ptr.vmem [resolvable:$true] %s188
          %194 = dma.hbm_to_vmem [thread:$0]  %s187, 512, %s189, [#allocation4], 256, 256, 16
        $region16: #{tpu_custom_call.1} parent=11 // pred_fallthru
          _
      $region12: #{tpu_custom_call.1} parent=5 // pred_fallthru
        _
      %p195 = scmp.lt.s32.totalorder %s18, 2
      // Predicated region
      $region17: #{tpu_custom_call.1} parent=5 // pred_check
        %p196 = pneg %p195
      $region18: #{tpu_custom_call.1} parent=5 // pred_check_branch
        %198 = sbr.rel (%p196) target = $region20
      $region19: #{tpu_custom_call.1} parent=5 // pred_region
        // Predicated region
        $region21: #{tpu_custom_call.1} parent=19 // pred_check
          %p199 = pneg %p76
        $region22: #{tpu_custom_call.1} parent=19 // pred_check_branch
          %201 = sbr.rel (%p199) target = $region24
        $region23: #{tpu_custom_call.1} parent=19 // pred_region
          %s202 = sand.u32 %s18, 1
          %s203 = scalar_lea.sflag [#allocation7], %s202
          %s204 = sand.u32 %s66, 1
          %s205 = smul.addr %s204, 512
          %s206 = scalar_lea.vmem [#allocation6], %s205
          %s207 = smul.u32 2, %s26
          %209 = vsyncadd %s203, 0
          %s210 = smul.addr %s207, 8
          %s211 = scalar_lea.hbm %s1, %s210
          %s212 = sshll.u32 %s211, 4
          %s213 = int_to_ptr.hbm [resolvable:$true] %s212
          %s214 = sshll.u32 %s206, 4
          %s215 = int_to_ptr.vmem [resolvable:$true] %s214
          %220 = dma.hbm_to_vmem [thread:$0]  %s213, 8192, %s215, %s203, 1024, 256, 16
        $region24: #{tpu_custom_call.1} parent=19 // pred_fallthru
          _
        // Predicated region
        $region25: #{tpu_custom_call.1} parent=19 // pred_check
          %p221 = pneg %p104
        $region26: #{tpu_custom_call.1} parent=19 // pred_check_branch
          %223 = sbr.rel (%p221) target = $region28
        $region27: #{tpu_custom_call.1} parent=19 // pred_region
          %s224 = sand.u32 %s18, 1
          %s225 = scalar_lea.sflag [#allocation7], %s224
          %s226 = sand.u32 %s94, 1
          %s227 = smul.addr %s226, 512
          %s228 = scalar_lea.vmem [#allocation8], %s227
          %s229 = sadd.s32 %s26, 2
          %s230 = smul.u32 2, %s229
          %232 = vsyncadd %s225, 0
          %s233 = smul.addr %s230, 8
          %s234 = scalar_lea.hbm %s2, %s233
          %s235 = sshll.u32 %s234, 4
          %s236 = int_to_ptr.hbm [resolvable:$true] %s235
          %s237 = sshll.u32 %s228, 4
          %s238 = int_to_ptr.vmem [resolvable:$true] %s237
          %243 = dma.hbm_to_vmem [thread:$0]  %s236, 8192, %s238, %s225, 1024, 256, 16
        $region28: #{tpu_custom_call.1} parent=19 // pred_fallthru
          _
        // Predicated region
        $region29: #{tpu_custom_call.1} parent=19 // pred_check
          %p244 = pneg %p130
        $region30: #{tpu_custom_call.1} parent=19 // pred_check_branch
          %246 = sbr.rel (%p244) target = $region32
        $region31: #{tpu_custom_call.1} parent=19 // pred_region
          %s247 = sand.u32 %s120, 1
          %s248 = scalar_lea.sflag [#allocation10], %s247
          %s249 = sand.u32 %s120, 1
          %s250 = smul.addr %s249, 512
          %s251 = scalar_lea.vmem [#allocation9], %s250
          %s252 = smul.u32 32, %s26
          %254 = vsyncadd %s248, 0
          %s255 = smul.addr %s252, 2
          %s256 = smul.addr %s255, 8
          %s257 = scalar_lea.hbm %s3, %s256
          %s258 = sshll.u32 %s257, 4
          %s259 = int_to_ptr.hbm [resolvable:$true] %s258
          %s260 = sshll.u32 %s251, 4
          %s261 = int_to_ptr.vmem [resolvable:$true] %s260
          %266 = dma.hbm_to_vmem [thread:$0]  %s259, 8192, %s261, %s248, 256, 256, 16
        $region32: #{tpu_custom_call.1} parent=19 // pred_fallthru
          _
      $region20: #{tpu_custom_call.1} parent=5 // pred_fallthru
        _
      %p267 = scmp.le.s32.totalorder 1, %s18
      %p268 = scmp.lt.s32.totalorder %s18, 3
      %p269 = pnand %p267, %p268
      %p270 = pneg %p269
      // Predicated region
      $region33: #{tpu_custom_call.1} parent=5 // pred_check
        _
      $region34: #{tpu_custom_call.1} parent=5 // pred_check_branch
        %272 = sbr.rel (%p269) target = $region36
      $region35: #{tpu_custom_call.1} parent=5 // pred_region
        %s273 = ssub.s32 %s18, 1
        // Predicated region
        $region37: #{tpu_custom_call.1} parent=35 // pred_check
          %p274 = pneg %p56
        $region38: #{tpu_custom_call.1} parent=35 // pred_check_branch
          %276 = sbr.rel (%p274) target = $region40
        $region39: #{tpu_custom_call.1} parent=35 // pred_region
          %278 = dma.done [#allocation4], 512
        $region40: #{tpu_custom_call.1} parent=35 // pred_fallthru
          _
        %s279 = sand.u32 %s23, 1
        %s280 = scalar_lea.sflag [#allocation7], %s279
        %s281 = sand.u32 %s69, 1
        %s282 = smul.addr %s281, 512
        %s283 = scalar_lea.vmem [#allocation6], %s282
        // Predicated region
        $region41: #{tpu_custom_call.1} parent=35 // pred_check
          %p284 = pneg %p82
        $region42: #{tpu_custom_call.1} parent=35 // pred_check_branch
          %286 = sbr.rel (%p284) target = $region44
        $region43: #{tpu_custom_call.1} parent=35 // pred_region
          %288 = dma.done %s280, 8192
        $region44: #{tpu_custom_call.1} parent=35 // pred_fallthru
          _
        %s289 = sand.u32 %s23, 1
        %s290 = scalar_lea.sflag [#allocation7], %s289
        %s291 = sand.u32 %s97, 1
        %s292 = smul.addr %s291, 512
        %s293 = scalar_lea.vmem [#allocation8], %s292
        // Predicated region
        $region45: #{tpu_custom_call.1} parent=35 // pred_check
          %p294 = pneg %p110
        $region46: #{tpu_custom_call.1} parent=35 // pred_check_branch
          %296 = sbr.rel (%p294) target = $region48
        $region47: #{tpu_custom_call.1} parent=35 // pred_region
          %298 = dma.done %s290, 8192
        $region48: #{tpu_custom_call.1} parent=35 // pred_fallthru
          _
        %s299 = sand.u32 %s123, 1
        %s300 = scalar_lea.sflag [#allocation10], %s299
        %s301 = sand.u32 %s123, 1
        %s302 = smul.addr %s301, 512
        %s303 = scalar_lea.vmem [#allocation9], %s302
        // Predicated region
        $region49: #{tpu_custom_call.1} parent=35 // pred_check
          %p304 = pneg %p136
        $region50: #{tpu_custom_call.1} parent=35 // pred_check_branch
          %306 = sbr.rel (%p304) target = $region52
        $region51: #{tpu_custom_call.1} parent=35 // pred_region
          %308 = dma.done %s300, 8192
        $region52: #{tpu_custom_call.1} parent=35 // pred_fallthru
          _
        %p309 = pneg %p56
        %p310 = pneg %p53
        %s311 = sand.u32 %s23, 1
        %s312 = scalar_lea.sflag [#allocation7], %s311
        %s313 = sand.u32 %s69, 1
        %s314 = smul.addr %s313, 512
        %s315 = scalar_lea.vmem [#allocation6], %s314
        %p316 = pneg %p82
        %p317 = pneg %p79
        %s318 = sand.u32 %s23, 1
        %s319 = scalar_lea.sflag [#allocation7], %s318
        %s320 = sand.u32 %s97, 1
        %s321 = smul.addr %s320, 512
        %s322 = scalar_lea.vmem [#allocation8], %s321
        %p323 = pneg %p110
        %p324 = pneg %p107
        %s325 = sand.u32 %s123, 1
        %s326 = scalar_lea.sflag [#allocation10], %s325
        %s327 = sand.u32 %s123, 1
        %s328 = smul.addr %s327, 512
        %s329 = scalar_lea.vmem [#allocation9], %s328
        %p330 = pneg %p136
        %p331 = pneg %p133
        %p332 = pneg %p162
        %p333 = pneg %p159
        %s334 = smul.u32 2, %s27
        %s335 = smul.u32 2, %s28
        %s336 = sadd.s32 %s28, 2
        %s337 = smul.u32 2, %s336
        %s338 = smul.u32 32, %s28
        %s339 = smul.u32 2, %s27
        %p340 = scmp.eq.s32.totalorder %s28, 0
        // Predicated region
        $region53: #{tpu_custom_call.1} parent=35 // pred_check
          %p341 = pneg %p340
        $region54: #{tpu_custom_call.1} parent=35 // pred_check_branch
          %343 = sbr.rel (%p341) target = $region56
        $region55: #{tpu_custom_call.1} parent=35 // pred_region
          %344 = vst [vmem:[#allocation2] sm:$0xff] 0.0
          %345 = vst [vmem:[#allocation2 + $0x8] sm:$0xff] 0.0
          %346 = vst [vmem:[#allocation2 + $0x10] sm:$0xff] 0.0
          %347 = vst [vmem:[#allocation2 + $0x18] sm:$0xff] 0.0
        $region56: #{tpu_custom_call.1} parent=35 // pred_fallthru
          _
        %v348 = vld [vmem:[#allocation3] sm:$0xff]
        %v349 = vld [vmem:[#allocation3 + $0x8] sm:$0xff]
        %v350 = vld [vmem:[#allocation3 + $0x10] sm:$0xff]
        %v351 = vld [vmem:[#allocation3 + $0x18] sm:$0xff]
        %v352 = vld [vmem:[%s283] sm:$0xff]
        %v353 = vld [vmem:[%s283 + $0x8] sm:$0xff]
        %v354 = vld [vmem:[%s283 + $0x10] sm:$0xff]
        %v355 = vld [vmem:[%s283 + $0x18] sm:$0xff]
        %v356 = vld [vmem:[%s283 + $0x20] sm:$0xff]
        %v357 = vld [vmem:[%s283 + $0x28] sm:$0xff]
        %v358 = vld [vmem:[%s283 + $0x30] sm:$0xff]
        %v359 = vld [vmem:[%s283 + $0x38] sm:$0xff]
        %v360 = vld [vmem:[%s283 + $0x40] sm:$0xff]
        %v361 = vld [vmem:[%s283 + $0x48] sm:$0xff]
        %v362 = vld [vmem:[%s283 + $0x50] sm:$0xff]
        %v363 = vld [vmem:[%s283 + $0x58] sm:$0xff]
        %v364 = vld [vmem:[%s283 + $0x60] sm:$0xff]
        %v365 = vld [vmem:[%s283 + $0x68] sm:$0xff]
        %v366 = vld [vmem:[%s283 + $0x70] sm:$0xff]
        %v367 = vld [vmem:[%s283 + $0x78] sm:$0xff]
        %v368 = vld [vmem:[%s283 + $0x80] sm:$0xff]
        %v369 = vld [vmem:[%s283 + $0x88] sm:$0xff]
        %v370 = vld [vmem:[%s283 + $0x90] sm:$0xff]
        %v371 = vld [vmem:[%s283 + $0x98] sm:$0xff]
        %v372 = vld [vmem:[%s283 + $0xa0] sm:$0xff]
        %v373 = vld [vmem:[%s283 + $0xa8] sm:$0xff]
        %v374 = vld [vmem:[%s283 + $0xb0] sm:$0xff]
        %v375 = vld [vmem:[%s283 + $0xb8] sm:$0xff]
        %v376 = vld [vmem:[%s283 + $0xc0] sm:$0xff]
        %v377 = vld [vmem:[%s283 + $0xc8] sm:$0xff]
        %v378 = vld [vmem:[%s283 + $0xd0] sm:$0xff]
        %v379 = vld [vmem:[%s283 + $0xd8] sm:$0xff]
        %v380 = vld [vmem:[%s283 + $0xe0] sm:$0xff]
        %v381 = vld [vmem:[%s283 + $0xe8] sm:$0xff]
        %v382 = vld [vmem:[%s283 + $0xf0] sm:$0xff]
        %v383 = vld [vmem:[%s283 + $0xf8] sm:$0xff]
        %v384 = vld [vmem:[%s283 + $0x100] sm:$0xff]
        %v385 = vld [vmem:[%s283 + $0x108] sm:$0xff]
        %v386 = vld [vmem:[%s283 + $0x110] sm:$0xff]
        %v387 = vld [vmem:[%s283 + $0x118] sm:$0xff]
        %v388 = vld [vmem:[%s283 + $0x120] sm:$0xff]
        %v389 = vld [vmem:[%s283 + $0x128] sm:$0xff]
        %v390 = vld [vmem:[%s283 + $0x130] sm:$0xff]
        %v391 = vld [vmem:[%s283 + $0x138] sm:$0xff]
        %v392 = vld [vmem:[%s283 + $0x140] sm:$0xff]
        %v393 = vld [vmem:[%s283 + $0x148] sm:$0xff]
        %v394 = vld [vmem:[%s283 + $0x150] sm:$0xff]
        %v395 = vld [vmem:[%s283 + $0x158] sm:$0xff]
        %v396 = vld [vmem:[%s283 + $0x160] sm:$0xff]
        %v397 = vld [vmem:[%s283 + $0x168] sm:$0xff]
        %v398 = vld [vmem:[%s283 + $0x170] sm:$0xff]
        %v399 = vld [vmem:[%s283 + $0x178] sm:$0xff]
        %v400 = vld [vmem:[%s283 + $0x180] sm:$0xff]
        %v401 = vld [vmem:[%s283 + $0x188] sm:$0xff]
        %v402 = vld [vmem:[%s283 + $0x190] sm:$0xff]
        %v403 = vld [vmem:[%s283 + $0x198] sm:$0xff]
        %v404 = vld [vmem:[%s283 + $0x1a0] sm:$0xff]
        %v405 = vld [vmem:[%s283 + $0x1a8] sm:$0xff]
        %v406 = vld [vmem:[%s283 + $0x1b0] sm:$0xff]
        %v407 = vld [vmem:[%s283 + $0x1b8] sm:$0xff]
        %v408 = vld [vmem:[%s283 + $0x1c0] sm:$0xff]
        %v409 = vld [vmem:[%s283 + $0x1c8] sm:$0xff]
        %v410 = vld [vmem:[%s283 + $0x1d0] sm:$0xff]
        %v411 = vld [vmem:[%s283 + $0x1d8] sm:$0xff]
        %v412 = vld [vmem:[%s283 + $0x1e0] sm:$0xff]
        %v413 = vld [vmem:[%s283 + $0x1e8] sm:$0xff]
        %v414 = vld [vmem:[%s283 + $0x1f0] sm:$0xff]
        %v415 = vld [vmem:[%s283 + $0x1f8] sm:$0xff]
        %416 = vmatpush.msra.mxu0 %v382
        %417 = vmatpush.msra.mxu0 %v380
        %418 = vmatpush.msra.mxu0 %v378
        %419 = vmatpush.msra.mxu0 %v376
        %420 = vmatpush.msra.mxu0 %v374
        %421 = vmatpush.msra.mxu0 %v372
        %422 = vmatpush.msra.mxu0 %v370
        %423 = vmatpush.msra.mxu0 %v368
        %424 = vmatpush.msra.mxu0 %v366
        %425 = vmatpush.msra.mxu0 %v364
        %426 = vmatpush.msra.mxu0 %v362
        %427 = vmatpush.msra.mxu0 %v360
        %428 = vmatpush.msra.mxu0 %v358
        %429 = vmatpush.msra.mxu0 %v356
        %430 = vmatpush.msra.mxu0 %v354
        %431 = vmatpush.msra.mxu0 %v352
        %432 = vmatmul.f32.gmra.mxu0 %v348
        %v433 = vpop.f32.mrf.mxu0
        %v434 = vadd.f32 0.0, %v433
        %435 = vmatmul.f32.gmra.mxu0 %v350
        %v436 = vpop.f32.mrf.mxu0
        %v437 = vadd.f32 0.0, %v436
        %438 = vdwg.mxu0
        %439 = vmatpush.msra.mxu0 %v414
        %440 = vmatpush.msra.mxu0 %v412
        %441 = vmatpush.msra.mxu0 %v410
        %442 = vmatpush.msra.mxu0 %v408
        %443 = vmatpush.msra.mxu0 %v406
        %444 = vmatpush.msra.mxu0 %v404
        %445 = vmatpush.msra.mxu0 %v402
        %446 = vmatpush.msra.mxu0 %v400
        %447 = vmatpush.msra.mxu0 %v398
        %448 = vmatpush.msra.mxu0 %v396
        %449 = vmatpush.msra.mxu0 %v394
        %450 = vmatpush.msra.mxu0 %v392
        %451 = vmatpush.msra.mxu0 %v390
        %452 = vmatpush.msra.mxu0 %v388
        %453 = vmatpush.msra.mxu0 %v386
        %454 = vmatpush.msra.mxu0 %v384
        %455 = vmatmul.f32.gmra.mxu0 %v349
        %v456 = vpop.f32.mrf.mxu0
        %v457 = vadd.f32 %v434, %v456
        %458 = vmatmul.f32.gmra.mxu0 %v351
        %v459 = vpop.f32.mrf.mxu0
        %v460 = vadd.f32 %v437, %v459
        %461 = vdwg.mxu0
        %462 = vmatpush.msra.mxu0 %v383
        %463 = vmatpush.msra.mxu0 %v381
        %464 = vmatpush.msra.mxu0 %v379
        %465 = vmatpush.msra.mxu0 %v377
        %466 = vmatpush.msra.mxu0 %v375
        %467 = vmatpush.msra.mxu0 %v373
        %468 = vmatpush.msra.mxu0 %v371
        %469 = vmatpush.msra.mxu0 %v369
        %470 = vmatpush.msra.mxu0 %v367
        %471 = vmatpush.msra.mxu0 %v365
        %472 = vmatpush.msra.mxu0 %v363
        %473 = vmatpush.msra.mxu0 %v361
        %474 = vmatpush.msra.mxu0 %v359
        %475 = vmatpush.msra.mxu0 %v357
        %476 = vmatpush.msra.mxu0 %v355
        %477 = vmatpush.msra.mxu0 %v353
        %478 = vmatmul.f32.gmra.mxu0 %v348
        %v479 = vpop.f32.mrf.mxu0
        %v480 = vadd.f32 0.0, %v479
        %481 = vmatmul.f32.gmra.mxu0 %v350
        %v482 = vpop.f32.mrf.mxu0
        %v483 = vadd.f32 0.0, %v482
        %484 = vdwg.mxu0
        %485 = vmatpush.msra.mxu0 %v415
        %486 = vmatpush.msra.mxu0 %v413
        %487 = vmatpush.msra.mxu0 %v411
        %488 = vmatpush.msra.mxu0 %v409
        %489 = vmatpush.msra.mxu0 %v407
        %490 = vmatpush.msra.mxu0 %v405
        %491 = vmatpush.msra.mxu0 %v403
        %492 = vmatpush.msra.mxu0 %v401
        %493 = vmatpush.msra.mxu0 %v399
        %494 = vmatpush.msra.mxu0 %v397
        %495 = vmatpush.msra.mxu0 %v395
        %496 = vmatpush.msra.mxu0 %v393
        %497 = vmatpush.msra.mxu0 %v391
        %498 = vmatpush.msra.mxu0 %v389
        %499 = vmatpush.msra.mxu0 %v387
        %500 = vmatpush.msra.mxu0 %v385
        %501 = vmatmul.f32.gmra.mxu0 %v349
        %v502 = vpop.f32.mrf.mxu0
        %v503 = vadd.f32 %v480, %v502
        %504 = vmatmul.f32.gmra.mxu0 %v351
        %v505 = vpop.f32.mrf.mxu0
        %v506 = vadd.f32 %v483, %v505
        %507 = vdwg.mxu0
        %v508 = vld [vmem:[%s293] sm:$0xff]
        %v509 = vld [vmem:[%s293 + $0x8] sm:$0xff]
        %v510 = vld [vmem:[%s293 + $0x10] sm:$0xff]
        %v511 = vld [vmem:[%s293 + $0x18] sm:$0xff]
        %v512 = vld [vmem:[%s293 + $0x20] sm:$0xff]
        %v513 = vld [vmem:[%s293 + $0x28] sm:$0xff]
        %v514 = vld [vmem:[%s293 + $0x30] sm:$0xff]
        %v515 = vld [vmem:[%s293 + $0x38] sm:$0xff]
        %v516 = vld [vmem:[%s293 + $0x40] sm:$0xff]
        %v517 = vld [vmem:[%s293 + $0x48] sm:$0xff]
        %v518 = vld [vmem:[%s293 + $0x50] sm:$0xff]
        %v519 = vld [vmem:[%s293 + $0x58] sm:$0xff]
        %v520 = vld [vmem:[%s293 + $0x60] sm:$0xff]
        %v521 = vld [vmem:[%s293 + $0x68] sm:$0xff]
        %v522 = vld [vmem:[%s293 + $0x70] sm:$0xff]
        %v523 = vld [vmem:[%s293 + $0x78] sm:$0xff]
        %v524 = vld [vmem:[%s293 + $0x80] sm:$0xff]
        %v525 = vld [vmem:[%s293 + $0x88] sm:$0xff]
        %v526 = vld [vmem:[%s293 + $0x90] sm:$0xff]
        %v527 = vld [vmem:[%s293 + $0x98] sm:$0xff]
        %v528 = vld [vmem:[%s293 + $0xa0] sm:$0xff]
        %v529 = vld [vmem:[%s293 + $0xa8] sm:$0xff]
        %v530 = vld [vmem:[%s293 + $0xb0] sm:$0xff]
        %v531 = vld [vmem:[%s293 + $0xb8] sm:$0xff]
        %v532 = vld [vmem:[%s293 + $0xc0] sm:$0xff]
        %v533 = vld [vmem:[%s293 + $0xc8] sm:$0xff]
        %v534 = vld [vmem:[%s293 + $0xd0] sm:$0xff]
        %v535 = vld [vmem:[%s293 + $0xd8] sm:$0xff]
        %v536 = vld [vmem:[%s293 + $0xe0] sm:$0xff]
        %v537 = vld [vmem:[%s293 + $0xe8] sm:$0xff]
        %v538 = vld [vmem:[%s293 + $0xf0] sm:$0xff]
        %v539 = vld [vmem:[%s293 + $0xf8] sm:$0xff]
        %v540 = vld [vmem:[%s293 + $0x100] sm:$0xff]
        %v541 = vld [vmem:[%s293 + $0x108] sm:$0xff]
        %v542 = vld [vmem:[%s293 + $0x110] sm:$0xff]
        %v543 = vld [vmem:[%s293 + $0x118] sm:$0xff]
        %v544 = vld [vmem:[%s293 + $0x120] sm:$0xff]
        %v545 = vld [vmem:[%s293 + $0x128] sm:$0xff]
        %v546 = vld [vmem:[%s293 + $0x130] sm:$0xff]
        %v547 = vld [vmem:[%s293 + $0x138] sm:$0xff]
        %v548 = vld [vmem:[%s293 + $0x140] sm:$0xff]
        %v549 = vld [vmem:[%s293 + $0x148] sm:$0xff]
        %v550 = vld [vmem:[%s293 + $0x150] sm:$0xff]
        %v551 = vld [vmem:[%s293 + $0x158] sm:$0xff]
        %v552 = vld [vmem:[%s293 + $0x160] sm:$0xff]
        %v553 = vld [vmem:[%s293 + $0x168] sm:$0xff]
        %v554 = vld [vmem:[%s293 + $0x170] sm:$0xff]
        %v555 = vld [vmem:[%s293 + $0x178] sm:$0xff]
        %v556 = vld [vmem:[%s293 + $0x180] sm:$0xff]
        %v557 = vld [vmem:[%s293 + $0x188] sm:$0xff]
        %v558 = vld [vmem:[%s293 + $0x190] sm:$0xff]
        %v559 = vld [vmem:[%s293 + $0x198] sm:$0xff]
        %v560 = vld [vmem:[%s293 + $0x1a0] sm:$0xff]
        %v561 = vld [vmem:[%s293 + $0x1a8] sm:$0xff]
        %v562 = vld [vmem:[%s293 + $0x1b0] sm:$0xff]
        %v563 = vld [vmem:[%s293 + $0x1b8] sm:$0xff]
        %v564 = vld [vmem:[%s293 + $0x1c0] sm:$0xff]
        %v565 = vld [vmem:[%s293 + $0x1c8] sm:$0xff]
        %v566 = vld [vmem:[%s293 + $0x1d0] sm:$0xff]
        %v567 = vld [vmem:[%s293 + $0x1d8] sm:$0xff]
        %v568 = vld [vmem:[%s293 + $0x1e0] sm:$0xff]
        %v569 = vld [vmem:[%s293 + $0x1e8] sm:$0xff]
        %v570 = vld [vmem:[%s293 + $0x1f0] sm:$0xff]
        %v571 = vld [vmem:[%s293 + $0x1f8] sm:$0xff]
        %572 = vmatpush.msra.mxu0 %v538
        %573 = vmatpush.msra.mxu0 %v536
        %574 = vmatpush.msra.mxu0 %v534
        %575 = vmatpush.msra.mxu0 %v532
        %576 = vmatpush.msra.mxu0 %v530
        %577 = vmatpush.msra.mxu0 %v528
        %578 = vmatpush.msra.mxu0 %v526
        %579 = vmatpush.msra.mxu0 %v524
        %580 = vmatpush.msra.mxu0 %v522
        %581 = vmatpush.msra.mxu0 %v520
        %582 = vmatpush.msra.mxu0 %v518
        %583 = vmatpush.msra.mxu0 %v516
        %584 = vmatpush.msra.mxu0 %v514
        %585 = vmatpush.msra.mxu0 %v512
        %586 = vmatpush.msra.mxu0 %v510
        %587 = vmatpush.msra.mxu0 %v508
        %588 = vmatmul.f32.gmra.mxu0 %v348
        %v589 = vpop.f32.mrf.mxu0
        %v590 = vadd.f32 0.0, %v589
        %591 = vmatmul.f32.gmra.mxu0 %v350
        %v592 = vpop.f32.mrf.mxu0
        %v593 = vadd.f32 0.0, %v592
        %594 = vdwg.mxu0
        %595 = vmatpush.msra.mxu0 %v570
        %596 = vmatpush.msra.mxu0 %v568
        %597 = vmatpush.msra.mxu0 %v566
        %598 = vmatpush.msra.mxu0 %v564
        %599 = vmatpush.msra.mxu0 %v562
        %600 = vmatpush.msra.mxu0 %v560
        %601 = vmatpush.msra.mxu0 %v558
        %602 = vmatpush.msra.mxu0 %v556
        %603 = vmatpush.msra.mxu0 %v554
        %604 = vmatpush.msra.mxu0 %v552
        %605 = vmatpush.msra.mxu0 %v550
        %606 = vmatpush.msra.mxu0 %v548
        %607 = vmatpush.msra.mxu0 %v546
        %608 = vmatpush.msra.mxu0 %v544
        %609 = vmatpush.msra.mxu0 %v542
        %610 = vmatpush.msra.mxu0 %v540
        %611 = vmatmul.f32.gmra.mxu0 %v349
        %v612 = vpop.f32.mrf.mxu0
        %v613 = vadd.f32 %v590, %v612
        %614 = vmatmul.f32.gmra.mxu0 %v351
        %v615 = vpop.f32.mrf.mxu0
        %v616 = vadd.f32 %v593, %v615
        %617 = vdwg.mxu0
        %618 = vmatpush.msra.mxu0 %v539
        %619 = vmatpush.msra.mxu0 %v537
        %620 = vmatpush.msra.mxu0 %v535
        %621 = vmatpush.msra.mxu0 %v533
        %622 = vmatpush.msra.mxu0 %v531
        %623 = vmatpush.msra.mxu0 %v529
        %624 = vmatpush.msra.mxu0 %v527
        %625 = vmatpush.msra.mxu0 %v525
        %626 = vmatpush.msra.mxu0 %v523
        %627 = vmatpush.msra.mxu0 %v521
        %628 = vmatpush.msra.mxu0 %v519
        %629 = vmatpush.msra.mxu0 %v517
        %630 = vmatpush.msra.mxu0 %v515
        %631 = vmatpush.msra.mxu0 %v513
        %632 = vmatpush.msra.mxu0 %v511
        %633 = vmatpush.msra.mxu0 %v509
        %634 = vmatmul.f32.gmra.mxu0 %v348
        %v635 = vpop.f32.mrf.mxu0
        %v636 = vadd.f32 0.0, %v635
        %637 = vmatmul.f32.gmra.mxu0 %v350
        %v638 = vpop.f32.mrf.mxu0
        %v639 = vadd.f32 0.0, %v638
        %640 = vdwg.mxu0
        %641 = vmatpush.msra.mxu0 %v571
        %642 = vmatpush.msra.mxu0 %v569
        %643 = vmatpush.msra.mxu0 %v567
        %644 = vmatpush.msra.mxu0 %v565
        %645 = vmatpush.msra.mxu0 %v563
        %646 = vmatpush.msra.mxu0 %v561
        %647 = vmatpush.msra.mxu0 %v559
        %648 = vmatpush.msra.mxu0 %v557
        %649 = vmatpush.msra.mxu0 %v555
        %650 = vmatpush.msra.mxu0 %v553
        %651 = vmatpush.msra.mxu0 %v551
        %652 = vmatpush.msra.mxu0 %v549
        %653 = vmatpush.msra.mxu0 %v547
        %654 = vmatpush.msra.mxu0 %v545
        %655 = vmatpush.msra.mxu0 %v543
        %656 = vmatpush.msra.mxu0 %v541
        %657 = vmatmul.f32.gmra.mxu0 %v349
        %v658 = vpop.f32.mrf.mxu0
        %v659 = vadd.f32 %v636, %v658
        %660 = vmatmul.f32.gmra.mxu0 %v351
        %v661 = vpop.f32.mrf.mxu0
        %v662 = vadd.f32 %v639, %v661
        %663 = vdwg.mxu0
        %v664 = vxor.u32 %v457, 2147483648
        %v665 = vxor.u32 %v503, 2147483648
        %v666 = vxor.u32 %v460, 2147483648
        %v667 = vxor.u32 %v506, 2147483648
        %v668 = vmul.f32 %v664, 1.442695
        %v669 = vpow.pop %v668
        %v670 = vmul.f32 %v665, 1.442695
        %v671 = vpow.pop %v670
        %v672 = vmul.f32 %v666, 1.442695
        %v673 = vpow.pop %v672
        %v674 = vmul.f32 %v667, 1.442695
        %v675 = vpow.pop %v674
        %v676 = vadd.f32 %v669, 1.0
        %v677 = vadd.f32 %v671, 1.0
        %v678 = vadd.f32 %v673, 1.0
        %v679 = vadd.f32 %v675, 1.0
        %v680 = vrcp.pop %v676
        %v681 = vmul.f32 %v676, %v680
        %v682 = vsub.f32 1.0, %v681
        %v683 = vmul.f32 %v680, %v682
        %v684 = vadd.f32 %v680, %v683
        %vm685 = vweird.f32 %v676
        %vm686 = vweird.f32 %v680
        %vm687 = vmor %vm685, %vm686
        %v688 = vsel %vm687, %v680, %v684
        %v689 = vand.u32 2147483647, %v676
        %vm690 = vcmp.eq.f32.partialorder %v689, 8.507059e+37
        %v691 = vand.u32 %v676, 2147483648
        %v692 = vor.u32 1.1754944e-38, %v691
        %v693 = vsel %vm690, %v692, %v688
        %v694 = vmul.f32 1.0, %v693
        %v695 = vrcp.pop %v677
        %v696 = vmul.f32 %v677, %v695
        %v697 = vsub.f32 1.0, %v696
        %v698 = vmul.f32 %v695, %v697
        %v699 = vadd.f32 %v695, %v698
        %vm700 = vweird.f32 %v677
        %vm701 = vweird.f32 %v695
        %vm702 = vmor %vm700, %vm701
        %v703 = vsel %vm702, %v695, %v699
        %v704 = vand.u32 2147483647, %v677
        %vm705 = vcmp.eq.f32.partialorder %v704, 8.507059e+37
        %v706 = vand.u32 %v677, 2147483648
        %v707 = vor.u32 1.1754944e-38, %v706
        %v708 = vsel %vm705, %v707, %v703
        %v709 = vmul.f32 1.0, %v708
        %v710 = vrcp.pop %v678
        %v711 = vmul.f32 %v678, %v710
        %v712 = vsub.f32 1.0, %v711
        %v713 = vmul.f32 %v710, %v712
        %v714 = vadd.f32 %v710, %v713
        %vm715 = vweird.f32 %v678
        %vm716 = vweird.f32 %v710
        %vm717 = vmor %vm715, %vm716
        %v718 = vsel %vm717, %v710, %v714
        %v719 = vand.u32 2147483647, %v678
        %vm720 = vcmp.eq.f32.partialorder %v719, 8.507059e+37
        %v721 = vand.u32 %v678, 2147483648
        %v722 = vor.u32 1.1754944e-38, %v721
        %v723 = vsel %vm720, %v722, %v718
        %v724 = vmul.f32 1.0, %v723
        %v725 = vrcp.pop %v679
        %v726 = vmul.f32 %v679, %v725
        %v727 = vsub.f32 1.0, %v726
        %v728 = vmul.f32 %v725, %v727
        %v729 = vadd.f32 %v725, %v728
        %vm730 = vweird.f32 %v679
        %vm731 = vweird.f32 %v725
        %vm732 = vmor %vm730, %vm731
        %v733 = vsel %vm732, %v725, %v729
        %v734 = vand.u32 2147483647, %v679
        %vm735 = vcmp.eq.f32.partialorder %v734, 8.507059e+37
        %v736 = vand.u32 %v679, 2147483648
        %v737 = vor.u32 1.1754944e-38, %v736
        %v738 = vsel %vm735, %v737, %v733
        %v739 = vmul.f32 1.0, %v738
        %v740 = vmul.f32 %v457, %v694
        %v741 = vmul.f32 %v503, %v709
        %v742 = vmul.f32 %v460, %v724
        %v743 = vmul.f32 %v506, %v739
        %v744 = vmul.f32 %v740, %v613
        %v745 = vmul.f32 %v741, %v659
        %v746 = vmul.f32 %v742, %v616
        %v747 = vmul.f32 %v743, %v662
        %v748 = vld [vmem:[#allocation2] sm:$0xff]
        %v749 = vld [vmem:[#allocation2 + $0x8] sm:$0xff]
        %v750 = vld [vmem:[#allocation2 + $0x10] sm:$0xff]
        %v751 = vld [vmem:[#allocation2 + $0x18] sm:$0xff]
        %v752 = vld [vmem:[%s303] sm:$0xff]
        %v753 = vld [vmem:[%s303 + $0x8] sm:$0xff]
        %v754 = vld [vmem:[%s303 + $0x10] sm:$0xff]
        %v755 = vld [vmem:[%s303 + $0x18] sm:$0xff]
        %v756 = vld [vmem:[%s303 + $0x20] sm:$0xff]
        %v757 = vld [vmem:[%s303 + $0x28] sm:$0xff]
        %v758 = vld [vmem:[%s303 + $0x30] sm:$0xff]
        %v759 = vld [vmem:[%s303 + $0x38] sm:$0xff]
        %v760 = vld [vmem:[%s303 + $0x40] sm:$0xff]
        %v761 = vld [vmem:[%s303 + $0x48] sm:$0xff]
        %v762 = vld [vmem:[%s303 + $0x50] sm:$0xff]
        %v763 = vld [vmem:[%s303 + $0x58] sm:$0xff]
        %v764 = vld [vmem:[%s303 + $0x60] sm:$0xff]
        %v765 = vld [vmem:[%s303 + $0x68] sm:$0xff]
        %v766 = vld [vmem:[%s303 + $0x70] sm:$0xff]
        %v767 = vld [vmem:[%s303 + $0x78] sm:$0xff]
        %v768 = vld [vmem:[%s303 + $0x80] sm:$0xff]
        %v769 = vld [vmem:[%s303 + $0x88] sm:$0xff]
        %v770 = vld [vmem:[%s303 + $0x90] sm:$0xff]
        %v771 = vld [vmem:[%s303 + $0x98] sm:$0xff]
        %v772 = vld [vmem:[%s303 + $0xa0] sm:$0xff]
        %v773 = vld [vmem:[%s303 + $0xa8] sm:$0xff]
        %v774 = vld [vmem:[%s303 + $0xb0] sm:$0xff]
        %v775 = vld [vmem:[%s303 + $0xb8] sm:$0xff]
        %v776 = vld [vmem:[%s303 + $0xc0] sm:$0xff]
        %v777 = vld [vmem:[%s303 + $0xc8] sm:$0xff]
        %v778 = vld [vmem:[%s303 + $0xd0] sm:$0xff]
        %v779 = vld [vmem:[%s303 + $0xd8] sm:$0xff]
        %v780 = vld [vmem:[%s303 + $0xe0] sm:$0xff]
        %v781 = vld [vmem:[%s303 + $0xe8] sm:$0xff]
        %v782 = vld [vmem:[%s303 + $0xf0] sm:$0xff]
        %v783 = vld [vmem:[%s303 + $0xf8] sm:$0xff]
        %v784 = vld [vmem:[%s303 + $0x100] sm:$0xff]
        %v785 = vld [vmem:[%s303 + $0x108] sm:$0xff]
        %v786 = vld [vmem:[%s303 + $0x110] sm:$0xff]
        %v787 = vld [vmem:[%s303 + $0x118] sm:$0xff]
        %v788 = vld [vmem:[%s303 + $0x120] sm:$0xff]
        %v789 = vld [vmem:[%s303 + $0x128] sm:$0xff]
        %v790 = vld [vmem:[%s303 + $0x130] sm:$0xff]
        %v791 = vld [vmem:[%s303 + $0x138] sm:$0xff]
        %v792 = vld [vmem:[%s303 + $0x140] sm:$0xff]
        %v793 = vld [vmem:[%s303 + $0x148] sm:$0xff]
        %v794 = vld [vmem:[%s303 + $0x150] sm:$0xff]
        %v795 = vld [vmem:[%s303 + $0x158] sm:$0xff]
        %v796 = vld [vmem:[%s303 + $0x160] sm:$0xff]
        %v797 = vld [vmem:[%s303 + $0x168] sm:$0xff]
        %v798 = vld [vmem:[%s303 + $0x170] sm:$0xff]
        %v799 = vld [vmem:[%s303 + $0x178] sm:$0xff]
        %v800 = vld [vmem:[%s303 + $0x180] sm:$0xff]
        %v801 = vld [vmem:[%s303 + $0x188] sm:$0xff]
        %v802 = vld [vmem:[%s303 + $0x190] sm:$0xff]
        %v803 = vld [vmem:[%s303 + $0x198] sm:$0xff]
        %v804 = vld [vmem:[%s303 + $0x1a0] sm:$0xff]
        %v805 = vld [vmem:[%s303 + $0x1a8] sm:$0xff]
        %v806 = vld [vmem:[%s303 + $0x1b0] sm:$0xff]
        %v807 = vld [vmem:[%s303 + $0x1b8] sm:$0xff]
        %v808 = vld [vmem:[%s303 + $0x1c0] sm:$0xff]
        %v809 = vld [vmem:[%s303 + $0x1c8] sm:$0xff]
        %v810 = vld [vmem:[%s303 + $0x1d0] sm:$0xff]
        %v811 = vld [vmem:[%s303 + $0x1d8] sm:$0xff]
        %v812 = vld [vmem:[%s303 + $0x1e0] sm:$0xff]
        %v813 = vld [vmem:[%s303 + $0x1e8] sm:$0xff]
        %v814 = vld [vmem:[%s303 + $0x1f0] sm:$0xff]
        %v815 = vld [vmem:[%s303 + $0x1f8] sm:$0xff]
        %816 = vmatpush.msra.mxu0 %v782
        %817 = vmatpush.msra.mxu0 %v780
        %818 = vmatpush.msra.mxu0 %v778
        %819 = vmatpush.msra.mxu0 %v776
        %820 = vmatpush.msra.mxu0 %v774
        %821 = vmatpush.msra.mxu0 %v772
        %822 = vmatpush.msra.mxu0 %v770
        %823 = vmatpush.msra.mxu0 %v768
        %824 = vmatpush.msra.mxu0 %v766
        %825 = vmatpush.msra.mxu0 %v764
        %826 = vmatpush.msra.mxu0 %v762
        %827 = vmatpush.msra.mxu0 %v760
        %828 = vmatpush.msra.mxu0 %v758
        %829 = vmatpush.msra.mxu0 %v756
        %830 = vmatpush.msra.mxu0 %v754
        %831 = vmatpush.msra.mxu0 %v752
        %832 = vmatmul.f32.gmra.mxu0 %v744
        %v833 = vpop.f32.mrf.mxu0
        %v834 = vadd.f32 0.0, %v833
        %835 = vmatmul.f32.gmra.mxu0 %v746
        %v836 = vpop.f32.mrf.mxu0
        %v837 = vadd.f32 0.0, %v836
        %838 = vdwg.mxu0
        %839 = vmatpush.msra.mxu0 %v814
        %840 = vmatpush.msra.mxu0 %v812
        %841 = vmatpush.msra.mxu0 %v810
        %842 = vmatpush.msra.mxu0 %v808
        %843 = vmatpush.msra.mxu0 %v806
        %844 = vmatpush.msra.mxu0 %v804
        %845 = vmatpush.msra.mxu0 %v802
        %846 = vmatpush.msra.mxu0 %v800
        %847 = vmatpush.msra.mxu0 %v798
        %848 = vmatpush.msra.mxu0 %v796
        %849 = vmatpush.msra.mxu0 %v794
        %850 = vmatpush.msra.mxu0 %v792
        %851 = vmatpush.msra.mxu0 %v790
        %852 = vmatpush.msra.mxu0 %v788
        %853 = vmatpush.msra.mxu0 %v786
        %854 = vmatpush.msra.mxu0 %v784
        %855 = vmatmul.f32.gmra.mxu0 %v745
        %v856 = vpop.f32.mrf.mxu0
        %v857 = vadd.f32 %v834, %v856
        %858 = vmatmul.f32.gmra.mxu0 %v747
        %v859 = vpop.f32.mrf.mxu0
        %v860 = vadd.f32 %v837, %v859
        %861 = vdwg.mxu0
        %862 = vmatpush.msra.mxu0 %v783
        %863 = vmatpush.msra.mxu0 %v781
        %864 = vmatpush.msra.mxu0 %v779
        %865 = vmatpush.msra.mxu0 %v777
        %866 = vmatpush.msra.mxu0 %v775
        %867 = vmatpush.msra.mxu0 %v773
        %868 = vmatpush.msra.mxu0 %v771
        %869 = vmatpush.msra.mxu0 %v769
        %870 = vmatpush.msra.mxu0 %v767
        %871 = vmatpush.msra.mxu0 %v765
        %872 = vmatpush.msra.mxu0 %v763
        %873 = vmatpush.msra.mxu0 %v761
        %874 = vmatpush.msra.mxu0 %v759
        %875 = vmatpush.msra.mxu0 %v757
        %876 = vmatpush.msra.mxu0 %v755
        %877 = vmatpush.msra.mxu0 %v753
        %878 = vmatmul.f32.gmra.mxu0 %v744
        %v879 = vpop.f32.mrf.mxu0
        %v880 = vadd.f32 0.0, %v879
        %881 = vmatmul.f32.gmra.mxu0 %v746
        %v882 = vpop.f32.mrf.mxu0
        %v883 = vadd.f32 0.0, %v882
        %884 = vdwg.mxu0
        %885 = vmatpush.msra.mxu0 %v815
        %886 = vmatpush.msra.mxu0 %v813
        %887 = vmatpush.msra.mxu0 %v811
        %888 = vmatpush.msra.mxu0 %v809
        %889 = vmatpush.msra.mxu0 %v807
        %890 = vmatpush.msra.mxu0 %v805
        %891 = vmatpush.msra.mxu0 %v803
        %892 = vmatpush.msra.mxu0 %v801
        %893 = vmatpush.msra.mxu0 %v799
        %894 = vmatpush.msra.mxu0 %v797
        %895 = vmatpush.msra.mxu0 %v795
        %896 = vmatpush.msra.mxu0 %v793
        %897 = vmatpush.msra.mxu0 %v791
        %898 = vmatpush.msra.mxu0 %v789
        %899 = vmatpush.msra.mxu0 %v787
        %900 = vmatpush.msra.mxu0 %v785
        %901 = vmatmul.f32.gmra.mxu0 %v745
        %v902 = vpop.f32.mrf.mxu0
        %v903 = vadd.f32 %v880, %v902
        %904 = vmatmul.f32.gmra.mxu0 %v747
        %v905 = vpop.f32.mrf.mxu0
        %v906 = vadd.f32 %v883, %v905
        %907 = vdwg.mxu0
        %v908 = vadd.f32 %v748, %v857
        %v909 = vadd.f32 %v749, %v903
        %v910 = vadd.f32 %v750, %v860
        %v911 = vadd.f32 %v751, %v906
        %912 = vst [vmem:[#allocation2] sm:$0xff] %v908
        %913 = vst [vmem:[#allocation2 + $0x8] sm:$0xff] %v909
        %914 = vst [vmem:[#allocation2 + $0x10] sm:$0xff] %v910
        %915 = vst [vmem:[#allocation2 + $0x18] sm:$0xff] %v911
        %p916 = scmp.eq.s32.totalorder %s28, 1
        // Predicated region
        $region57: #{tpu_custom_call.1} parent=35 // pred_check
          %p917 = pneg %p916
        $region58: #{tpu_custom_call.1} parent=35 // pred_check_branch
          %919 = sbr.rel (%p917) target = $region60
        $region59: #{tpu_custom_call.1} parent=35 // pred_region
          %v920 = vld [vmem:[#allocation2] sm:$0xff]
          %v921 = vld [vmem:[#allocation2 + $0x8] sm:$0xff]
          %v922 = vld [vmem:[#allocation2 + $0x10] sm:$0xff]
          %v923 = vld [vmem:[#allocation2 + $0x18] sm:$0xff]
          %924 = vst [vmem:[#allocation11] sm:$0xff] %v920
          %925 = vst [vmem:[#allocation11 + $0x8] sm:$0xff] %v921
          %926 = vst [vmem:[#allocation11 + $0x10] sm:$0xff] %v922
          %927 = vst [vmem:[#allocation11 + $0x18] sm:$0xff] %v923
        $region60: #{tpu_custom_call.1} parent=35 // pred_fallthru
          _
        // Predicated region
        $region61: #{tpu_custom_call.1} parent=35 // pred_check
          %p928 = pneg %p159
        $region62: #{tpu_custom_call.1} parent=35 // pred_check_branch
          %930 = sbr.rel (%p928) target = $region64
        $region63: #{tpu_custom_call.1} parent=35 // pred_region
          %s931 = smul.u32 2, %s27
          %933 = vsyncadd [#allocation5], 0
          %s934 = smul.addr %s931, 2
          %s935 = smul.addr %s934, 8
          %s936 = scalar_lea.hbm %s4, %s935
          %s937 = sshll.u32 [#allocation11], 4
          %s938 = int_to_ptr.vmem [resolvable:$true] %s937
          %s939 = sshll.u32 %s936, 4
          %s940 = int_to_ptr.hbm [resolvable:$true] %s939
          %945 = dma.vmem_to_hbm [thread:$0]  %s938, 512, %s940, [#allocation5], 256, 256, 16
        $region64: #{tpu_custom_call.1} parent=35 // pred_fallthru
          _
        // Predicated region
        $region65: #{tpu_custom_call.1} parent=35 // pred_check
          %p946 = pneg %p159
        $region66: #{tpu_custom_call.1} parent=35 // pred_check_branch
          %948 = sbr.rel (%p946) target = $region68
        $region67: #{tpu_custom_call.1} parent=35 // pred_region
          %950 = dma.done [#allocation5], 512
        $region68: #{tpu_custom_call.1} parent=35 // pred_fallthru
          _
      $region36: #{tpu_custom_call.1} parent=5 // pred_fallthru
        _
      %p951 = scmp.le.s32.totalorder 2, %s18
      // Predicated region
      $region69: #{tpu_custom_call.1} parent=5 // pred_check
        %p952 = pneg %p951
      $region70: #{tpu_custom_call.1} parent=5 // pred_check_branch
        %954 = sbr.rel (%p952) target = $region72
      $region71: #{tpu_custom_call.1} parent=5 // pred_region
        %s955 = ssub.s32 %s18, 2
      $region72: #{tpu_custom_call.1} parent=5 // pred_fallthru
        _
    $region6: #{tpu_custom_call.1} parent=1 // loop_footer
      %s22 = sadd.s32 1, %s18
    $region7: #{tpu_custom_call.1} parent=1 // loop_footer_branch
      %17 = sbr.rel target = $region3
    $region8: #{tpu_custom_call.1} parent=1 // loop_exit
      _
    %956 = vsyncpa [#allocation4], 1
    %s957 = scalar_lea.sflag [#allocation4], 1
    %958 = vsyncpa %s957, 1
    %959 = vsyncpa [#allocation7], 1
    %s960 = scalar_lea.sflag [#allocation7], 1
    %961 = vsyncpa %s960, 1
    %962 = vsyncpa [#allocation10], 1
    %s963 = scalar_lea.sflag [#allocation10], 1
    %964 = vsyncpa %s963, 1
    %965 = vsyncpa [#allocation5], 1
    %s966 = scalar_lea.sflag [#allocation5], 1
    %967 = vsyncpa %s966, 1

</llo_original>
